<compile_context>
chip_gen: v6e
topology: v6e:2x2x1
jax: 0.10.0
libtpu: 0.0.40
codegen_flags: <defaults>
</compile_context>

<pallas_src>
import math
import jax
import jax.numpy as jnp
from jax import lax
from jax.experimental import pallas as pl
from jax.experimental.pallas import tpu as pltpu


# ---- model hyperparams (small, consistent with the module) ----
B = 2           # batch
S = 8           # sequence length
E = 32          # self_attention_embed_dim
H = 4           # self_attention_num_heads
D = E // H      # head dim
BS = B * S      # fused batch*sequence rows

# Packed-parameter tile layout (single lane-dense f32 tile, one DMA):
#   rows [0, E)        cols [0, 3E) : W_qkv^T  (1/sqrt(D) folded into Q cols)
#   rows [E, 2E)       cols [0, E)  : W_o^T
#   row  2E            cols [0, 3E) : b_qkv    (1/sqrt(D) folded into Q part)
#   row  2E+1          cols [0, E)  : b_o
#   rows [MASK_ROW, MASK_ROW+BS) cols [0, BS) : additive block-diag batch mask
MASK_ROW = 2 * E + 8                 # 72: keeps the mask sublane-aligned
P_ROWS = MASK_ROW + BS               # 88
P_COLS = 128                         # 3E + E = 128 -> lane-dense tile


def mha_kernel(x_ref, p_ref, o_ref, pv_buf):
    """Multi-head self-attention for both batch elements in one body.

    x_ref:  (BS, E)        input slab (batch-major, sequence-minor rows)
    p_ref:  (P_ROWS, 128)  packed parameters + mask (layout above)
    o_ref:  (BS, E)        attention output slab
    pv_buf: (BS, E) VMEM   per-head context written at lane offset h*D
    """
    f32 = jnp.float32
    bf16 = jnp.bfloat16

    x = x_ref[...]                                        # (BS, E) f32

    w_qkv = p_ref[0:E, 0:3 * E]                           # (E, 3E) f32
    w_o = p_ref[E:2 * E, 0:E]                             # (E, E)  f32
    b_qkv = p_ref[2 * E:2 * E + 1, 0:3 * E]               # (1, 3E) f32
    b_o = p_ref[2 * E + 1:2 * E + 2, 0:E]                 # (1, E)  f32
    mask = p_ref[MASK_ROW:MASK_ROW + BS, 0:BS]            # (BS, BS) f32, 0/-1e30

    # Fused QKV projection for both batches: one MXU issue, bf16 operands,
    # f32 accumulation.  1/sqrt(D) is already folded into the Q columns/bias.
    qkv = jnp.dot(x.astype(bf16), w_qkv.astype(bf16),
                  preferred_element_type=f32) + b_qkv     # (BS, 3E) f32

    q = qkv[:, 0 * E:1 * E]                               # (BS, E), pre-scaled
    k = qkv[:, 1 * E:2 * E]
    v = qkv[:, 2 * E:3 * E]

    # Static loop over heads; each head handles both batch elements at once
    # (the block-diagonal additive mask keeps the two batches independent).
    for h in range(H):
        qh = q[:, h * D:(h + 1) * D]                      # (BS, D)
        kh = k[:, h * D:(h + 1) * D]
        vh = v[:, h * D:(h + 1) * D]

        # q @ k^T without materializing a transpose (contract last dims).
        scores = lax.dot_general(qh, kh, (((1,), (1,)), ((), ())),
                                 preferred_element_type=f32)       # (BS, BS)
        scores = scores + mask
        scores = scores - jnp.max(scores, axis=-1, keepdims=True)
        p = jnp.exp(scores)                                        # f32, <= 1

        # Deferred softmax normalization: issue the MXU matmul on the
        # unnormalized probabilities first; the XLU row-sum and EUP reciprocal
        # overlap with it, and the normalize multiply is (BS, D) not (BS, BS).
        pv_un = jnp.dot(p.astype(bf16), vh.astype(bf16),
                        preferred_element_type=f32)                # (BS, D)
        inv = pl.reciprocal(jnp.sum(p, axis=-1, keepdims=True), approx=True)
        pv_buf[:, h * D:(h + 1) * D] = pv_un * inv

    # Fused output projection: one (BS,E)@(E,E) matmul instead of four K=8
    # matmuls and a serial accumulator-add chain.
    out = jnp.dot(pv_buf[...].astype(bf16), w_o.astype(bf16),
                  preferred_element_type=f32) + b_o
    o_ref[...] = out.astype(o_ref.dtype)


def _pack_params(w_in, b_in, w_out, b_out):
    """Host-side parameter packing (do ONCE at init if calling repeatedly).

    Folds the 1/sqrt(D) score scale into the Q columns of the in-projection
    and packs all weights/biases plus the block-diagonal batch mask into a
    single lane-dense (P_ROWS, 128) f32 tile -> one input DMA instead of five.
    """
    scale = jnp.float32(1.0 / math.sqrt(D))
    w_in_s = w_in.at[:, 0:E].multiply(scale)              # scale into Q cols
    b_in_s = b_in.at[:, 0:E].multiply(scale)              # scale into Q bias

    rows = jnp.arange(BS) // S
    mask = jnp.where(rows[:, None] == rows[None, :],
                     jnp.float32(0.0), jnp.float32(-1e30))

    p = jnp.zeros((P_ROWS, P_COLS), jnp.float32)
    p = p.at[0:E, 0:3 * E].set(w_in_s)
    p = p.at[E:2 * E, 0:E].set(w_out)
    p = p.at[2 * E, 0:3 * E].set(b_in_s[0])
    p = p.at[2 * E + 1, 0:E].set(b_out[0])
    p = p.at[MASK_ROW:MASK_ROW + BS, 0:BS].set(mask)
    return p


def self_attention1_forward(x, w_in, b_in, w_out, b_out):
    """x: (B, S, E).  Returns (B, S*E) as in the PyTorch module."""
    x2d = x.reshape(BS, E)                 # batch-major, sequence-minor rows
    params = _pack_params(w_in, b_in, w_out, b_out)

    out = pl.pallas_call(
        mha_kernel,
        out_shape=jax.ShapeDtypeStruct((BS, E), jnp.float32),
        grid_spec=pltpu.PrefetchScalarGridSpec(
            num_scalar_prefetch=0,
            grid=(1,),                                     # single step
            in_specs=[
                pl.BlockSpec((BS, E), lambda i: (0, 0)),          # x slab
                pl.BlockSpec((P_ROWS, P_COLS), lambda i: (0, 0)),  # packed params
            ],
            out_specs=pl.BlockSpec((BS, E), lambda i: (0, 0)),
            scratch_shapes=[pltpu.VMEM((BS, E), jnp.float32)],     # pv buffer
        ),
        compiler_params=pltpu.CompilerParams(
            dimension_semantics=("arbitrary",)),
    )(x2d, params)

    # Row-major reshape (B*S, E) -> (B, S*E) is exactly
    # torch.cat([attn[:, i, :] for i in range(S)], dim=-1).
    return out.reshape(B, S * E)


def _reference(x, w_in, b_in, w_out, b_out):
    """Pure-JAX f32 reference of nn.MultiheadAttention self-attention."""
    qkv = x @ w_in + b_in[0]                       # (B, S, 3E)
    q, k, v = jnp.split(qkv, 3, axis=-1)

    def split_heads(t):                            # (B, S, E) -> (B, H, S, D)
        return t.reshape(B, S, H, D).transpose(0, 2, 1, 3)

    qh, kh, vh = split_heads(q), split_heads(k), split_heads(v)
    scores = jnp.einsum("bhqd,bhkd->bhqk", qh, kh) / math.sqrt(D)
    p = jax.nn.softmax(scores, axis=-1)
    o = jnp.einsum("bhqk,bhkd->bhqd", p, vh)       # (B, H, S, D)
    o = o.transpose(0, 2, 1, 3).reshape(B, S, E)
    o = o @ w_out + b_out[0]
    return o.reshape(B, S * E)


if __name__ == "__main__":
    key = jax.random.PRNGKey(0)
    k_x, k_wi, k_bi, k_wo, k_bo = jax.random.split(key, 5)

    # Deterministic parameter init (shapes per nn.MultiheadAttention(E, H)):
    #   in_proj_weight (3E, E), in_proj_bias (3E,), out_proj (E, E), bias (E,).
    # Weights are stored pre-transposed for the  x @ W  form.
    x = jax.random.normal(k_x, (B, S, E), dtype=jnp.float32)
    w_in = jax.random.normal(k_wi, (E, 3 * E), dtype=jnp.float32) * 0.1
    b_in = jax.random.normal(k_bi, (1, 3 * E), dtype=jnp.float32) * 0.1
    w_out = jax.random.normal(k_wo, (E, E), dtype=jnp.float32) * 0.1
    b_out = jax.random.normal(k_bo, (1, E), dtype=jnp.float32) * 0.1

    out = self_attention1_forward(x, w_in, b_in, w_out, b_out)
    out = jax.block_until_ready(out)

    ref = _reference(x, w_in, b_in, w_out, b_out)
    assert out.shape == (B, S * E), out.shape
    # Tolerance accounts for bf16 MXU operands (f32 accumulation) and the
    # EUP approximate reciprocal in the softmax denominator.
    assert jnp.allclose(out, ref, atol=3e-2, rtol=3e-2), "mismatch vs reference"

    print("KERNEL_OK")
</pallas_src>

<mosaic_0001>
module attributes {stable_mosaic.version = 11 : i64} {
  func.func @mha_kernel(%arg0: i32, %arg1: memref<16x32xf32, #tpu.memory_space<vmem>>, %arg2: memref<88x128xf32, #tpu.memory_space<vmem>>, %arg3: memref<16x32xf32, #tpu.memory_space<vmem>>, %arg4: memref<16x32xf32, #tpu.memory_space<vmem>>) attributes {dimension_semantics = [#tpu.dimension_semantics<arbitrary>], iteration_bounds = array<i64: 1>, scalar_prefetch = 0 : i64, scratch_operands = 1 : i64, tpu.core_type = #tpu.core_type<tc>, window_params = [{pipeline_mode = #tpu.pipeline_mode<synchronous>, transform_indices = @transform_0, window_bounds = array<i64: 16, 32>}, {pipeline_mode = #tpu.pipeline_mode<synchronous>, transform_indices = @transform_1, window_bounds = array<i64: 88, 128>}, {pipeline_mode = #tpu.pipeline_mode<synchronous>, transform_indices = @transform_2, window_bounds = array<i64: 16, 32>}]} {
    %c0 = arith.constant 0 : index
    %c0_0 = arith.constant 0 : index
    %0 = vector.load %arg1[%c0, %c0_0] : memref<16x32xf32, #tpu.memory_space<vmem>>, vector<16x32xf32>
    %c0_1 = arith.constant 0 : index
    %c0_2 = arith.constant 0 : index
    %1 = vector.load %arg2[%c0_1, %c0_2] : memref<88x128xf32, #tpu.memory_space<vmem>>, vector<32x96xf32>
    %c32 = arith.constant 32 : index
    %c0_3 = arith.constant 0 : index
    %2 = vector.load %arg2[%c32, %c0_3] : memref<88x128xf32, #tpu.memory_space<vmem>>, vector<32x32xf32>
    %c64 = arith.constant 64 : index
    %c0_4 = arith.constant 0 : index
    %3 = vector.load %arg2[%c64, %c0_4] : memref<88x128xf32, #tpu.memory_space<vmem>>, vector<1x96xf32>
    %c65 = arith.constant 65 : index
    %c0_5 = arith.constant 0 : index
    %4 = vector.load %arg2[%c65, %c0_5] : memref<88x128xf32, #tpu.memory_space<vmem>>, vector<1x32xf32>
    %c72 = arith.constant 72 : index
    %c0_6 = arith.constant 0 : index
    %5 = vector.load %arg2[%c72, %c0_6] : memref<88x128xf32, #tpu.memory_space<vmem>>, vector<16x16xf32>
    %6 = arith.truncf %0 : vector<16x32xf32> to vector<16x32xbf16>
    %7 = arith.truncf %1 : vector<32x96xf32> to vector<32x96xbf16>
    %cst = arith.constant dense<0.000000e+00> : vector<16x96xf32>
    %8 = tpu.matmul %6, %7, %cst {dimension_numbers = #tpu.dot_dimension_numbers<[1], [0], [0], [1], [0, 0, 1, 1], [], []>} : vector<16x32xbf16>, vector<32x96xbf16>, vector<16x96xf32> -> vector<16x96xf32>
    %9 = vector.broadcast %3 : vector<1x96xf32> to vector<16x96xf32>
    %10 = arith.addf %8, %9 : vector<16x96xf32>
    %11 = vector.extract_strided_slice %10 {offsets = [0, 0], sizes = [16, 32], strides = [1, 1]} : vector<16x96xf32> to vector<16x32xf32>
    %12 = vector.extract_strided_slice %10 {offsets = [0, 32], sizes = [16, 32], strides = [1, 1]} : vector<16x96xf32> to vector<16x32xf32>
    %13 = vector.extract_strided_slice %10 {offsets = [0, 64], sizes = [16, 32], strides = [1, 1]} : vector<16x96xf32> to vector<16x32xf32>
    %14 = vector.extract_strided_slice %11 {offsets = [0, 0], sizes = [16, 8], strides = [1, 1]} : vector<16x32xf32> to vector<16x8xf32>
    %15 = vector.extract_strided_slice %12 {offsets = [0, 0], sizes = [16, 8], strides = [1, 1]} : vector<16x32xf32> to vector<16x8xf32>
    %16 = vector.extract_strided_slice %13 {offsets = [0, 0], sizes = [16, 8], strides = [1, 1]} : vector<16x32xf32> to vector<16x8xf32>
    %cst_7 = arith.constant dense<0.000000e+00> : vector<16x16xf32>
    %17 = tpu.matmul %14, %15, %cst_7 {dimension_numbers = #tpu.dot_dimension_numbers<[1], [1], [0], [0], [0, 0, 1, 0], [], []>} : vector<16x8xf32>, vector<16x8xf32>, vector<16x16xf32> -> vector<16x16xf32>
    %18 = arith.addf %17, %5 : vector<16x16xf32>
    %cst_8 = arith.constant dense<0xFF800000> : vector<16xf32>
    %19 = vector.multi_reduction <maximumf>, %18, %cst_8 [1] : vector<16x16xf32> to vector<16xf32>
    %20 = vector.shape_cast %19 : vector<16xf32> to vector<16x1xf32>
    %21 = vector.broadcast %20 : vector<16x1xf32> to vector<16x16xf32>
    %22 = arith.subf %18, %21 : vector<16x16xf32>
    %23 = math.exp %22 : vector<16x16xf32>
    %24 = arith.truncf %23 : vector<16x16xf32> to vector<16x16xbf16>
    %25 = arith.truncf %16 : vector<16x8xf32> to vector<16x8xbf16>
    %cst_9 = arith.constant dense<0.000000e+00> : vector<16x8xf32>
    %26 = tpu.matmul %24, %25, %cst_9 {dimension_numbers = #tpu.dot_dimension_numbers<[1], [0], [0], [1], [0, 0, 1, 1], [], []>} : vector<16x16xbf16>, vector<16x8xbf16>, vector<16x8xf32> -> vector<16x8xf32>
    %cst_10 = arith.constant dense<0.000000e+00> : vector<16xf32>
    %27 = vector.multi_reduction <add>, %23, %cst_10 [1] : vector<16x16xf32> to vector<16xf32>
    %28 = vector.shape_cast %27 : vector<16xf32> to vector<16x1xf32>
    %29 = tpu.reciprocal %28 {approx = true} : vector<16x1xf32> -> vector<16x1xf32>
    %30 = vector.broadcast %29 : vector<16x1xf32> to vector<16x8xf32>
    %31 = arith.mulf %26, %30 : vector<16x8xf32>
    %c0_11 = arith.constant 0 : index
    %c0_12 = arith.constant 0 : index
    %32 = vector.load %arg4[%c0_11, %c0_12] : memref<16x32xf32, #tpu.memory_space<vmem>>, vector<16x8xf32>
    tpu.vector_store %arg4[%c0_11, %c0_12], %31 {strides = array<i32>} : memref<16x32xf32, #tpu.memory_space<vmem>>, vector<16x8xf32>,
    %33 = vector.extract_strided_slice %11 {offsets = [0, 8], sizes = [16, 8], strides = [1, 1]} : vector<16x32xf32> to vector<16x8xf32>
    %34 = vector.extract_strided_slice %12 {offsets = [0, 8], sizes = [16, 8], strides = [1, 1]} : vector<16x32xf32> to vector<16x8xf32>
    %35 = vector.extract_strided_slice %13 {offsets = [0, 8], sizes = [16, 8], strides = [1, 1]} : vector<16x32xf32> to vector<16x8xf32>
    %cst_13 = arith.constant dense<0.000000e+00> : vector<16x16xf32>
    %36 = tpu.matmul %33, %34, %cst_13 {dimension_numbers = #tpu.dot_dimension_numbers<[1], [1], [0], [0], [0, 0, 1, 0], [], []>} : vector<16x8xf32>, vector<16x8xf32>, vector<16x16xf32> -> vector<16x16xf32>
    %37 = arith.addf %36, %5 : vector<16x16xf32>
    %cst_14 = arith.constant dense<0xFF800000> : vector<16xf32>
    %38 = vector.multi_reduction <maximumf>, %37, %cst_14 [1] : vector<16x16xf32> to vector<16xf32>
    %39 = vector.shape_cast %38 : vector<16xf32> to vector<16x1xf32>
    %40 = vector.broadcast %39 : vector<16x1xf32> to vector<16x16xf32>
    %41 = arith.subf %37, %40 : vector<16x16xf32>
    %42 = math.exp %41 : vector<16x16xf32>
    %43 = arith.truncf %42 : vector<16x16xf32> to vector<16x16xbf16>
    %44 = arith.truncf %35 : vector<16x8xf32> to vector<16x8xbf16>
    %cst_15 = arith.constant dense<0.000000e+00> : vector<16x8xf32>
    %45 = tpu.matmul %43, %44, %cst_15 {dimension_numbers = #tpu.dot_dimension_numbers<[1], [0], [0], [1], [0, 0, 1, 1], [], []>} : vector<16x16xbf16>, vector<16x8xbf16>, vector<16x8xf32> -> vector<16x8xf32>
    %cst_16 = arith.constant dense<0.000000e+00> : vector<16xf32>
    %46 = vector.multi_reduction <add>, %42, %cst_16 [1] : vector<16x16xf32> to vector<16xf32>
    %47 = vector.shape_cast %46 : vector<16xf32> to vector<16x1xf32>
    %48 = tpu.reciprocal %47 {approx = true} : vector<16x1xf32> -> vector<16x1xf32>
    %49 = vector.broadcast %48 : vector<16x1xf32> to vector<16x8xf32>
    %50 = arith.mulf %45, %49 : vector<16x8xf32>
    %c0_17 = arith.constant 0 : index
    %c8 = arith.constant 8 : index
    %51 = vector.load %arg4[%c0_17, %c8] : memref<16x32xf32, #tpu.memory_space<vmem>>, vector<16x8xf32>
    tpu.vector_store %arg4[%c0_17, %c8], %50 {strides = array<i32>} : memref<16x32xf32, #tpu.memory_space<vmem>>, vector<16x8xf32>,
    %52 = vector.extract_strided_slice %11 {offsets = [0, 16], sizes = [16, 8], strides = [1, 1]} : vector<16x32xf32> to vector<16x8xf32>
    %53 = vector.extract_strided_slice %12 {offsets = [0, 16], sizes = [16, 8], strides = [1, 1]} : vector<16x32xf32> to vector<16x8xf32>
    %54 = vector.extract_strided_slice %13 {offsets = [0, 16], sizes = [16, 8], strides = [1, 1]} : vector<16x32xf32> to vector<16x8xf32>
    %cst_18 = arith.constant dense<0.000000e+00> : vector<16x16xf32>
    %55 = tpu.matmul %52, %53, %cst_18 {dimension_numbers = #tpu.dot_dimension_numbers<[1], [1], [0], [0], [0, 0, 1, 0], [], []>} : vector<16x8xf32>, vector<16x8xf32>, vector<16x16xf32> -> vector<16x16xf32>
    %56 = arith.addf %55, %5 : vector<16x16xf32>
    %cst_19 = arith.constant dense<0xFF800000> : vector<16xf32>
    %57 = vector.multi_reduction <maximumf>, %56, %cst_19 [1] : vector<16x16xf32> to vector<16xf32>
    %58 = vector.shape_cast %57 : vector<16xf32> to vector<16x1xf32>
    %59 = vector.broadcast %58 : vector<16x1xf32> to vector<16x16xf32>
    %60 = arith.subf %56, %59 : vector<16x16xf32>
    %61 = math.exp %60 : vector<16x16xf32>
    %62 = arith.truncf %61 : vector<16x16xf32> to vector<16x16xbf16>
    %63 = arith.truncf %54 : vector<16x8xf32> to vector<16x8xbf16>
    %cst_20 = arith.constant dense<0.000000e+00> : vector<16x8xf32>
    %64 = tpu.matmul %62, %63, %cst_20 {dimension_numbers = #tpu.dot_dimension_numbers<[1], [0], [0], [1], [0, 0, 1, 1], [], []>} : vector<16x16xbf16>, vector<16x8xbf16>, vector<16x8xf32> -> vector<16x8xf32>
    %cst_21 = arith.constant dense<0.000000e+00> : vector<16xf32>
    %65 = vector.multi_reduction <add>, %61, %cst_21 [1] : vector<16x16xf32> to vector<16xf32>
    %66 = vector.shape_cast %65 : vector<16xf32> to vector<16x1xf32>
    %67 = tpu.reciprocal %66 {approx = true} : vector<16x1xf32> -> vector<16x1xf32>
    %68 = vector.broadcast %67 : vector<16x1xf32> to vector<16x8xf32>
    %69 = arith.mulf %64, %68 : vector<16x8xf32>
    %c0_22 = arith.constant 0 : index
    %c16 = arith.constant 16 : index
    %70 = vector.load %arg4[%c0_22, %c16] : memref<16x32xf32, #tpu.memory_space<vmem>>, vector<16x8xf32>
    tpu.vector_store %arg4[%c0_22, %c16], %69 {strides = array<i32>} : memref<16x32xf32, #tpu.memory_space<vmem>>, vector<16x8xf32>,
    %71 = vector.extract_strided_slice %11 {offsets = [0, 24], sizes = [16, 8], strides = [1, 1]} : vector<16x32xf32> to vector<16x8xf32>
    %72 = vector.extract_strided_slice %12 {offsets = [0, 24], sizes = [16, 8], strides = [1, 1]} : vector<16x32xf32> to vector<16x8xf32>
    %73 = vector.extract_strided_slice %13 {offsets = [0, 24], sizes = [16, 8], strides = [1, 1]} : vector<16x32xf32> to vector<16x8xf32>
    %cst_23 = arith.constant dense<0.000000e+00> : vector<16x16xf32>
    %74 = tpu.matmul %71, %72, %cst_23 {dimension_numbers = #tpu.dot_dimension_numbers<[1], [1], [0], [0], [0, 0, 1, 0], [], []>} : vector<16x8xf32>, vector<16x8xf32>, vector<16x16xf32> -> vector<16x16xf32>
    %75 = arith.addf %74, %5 : vector<16x16xf32>
    %cst_24 = arith.constant dense<0xFF800000> : vector<16xf32>
    %76 = vector.multi_reduction <maximumf>, %75, %cst_24 [1] : vector<16x16xf32> to vector<16xf32>
    %77 = vector.shape_cast %76 : vector<16xf32> to vector<16x1xf32>
    %78 = vector.broadcast %77 : vector<16x1xf32> to vector<16x16xf32>
    %79 = arith.subf %75, %78 : vector<16x16xf32>
    %80 = math.exp %79 : vector<16x16xf32>
    %81 = arith.truncf %80 : vector<16x16xf32> to vector<16x16xbf16>
    %82 = arith.truncf %73 : vector<16x8xf32> to vector<16x8xbf16>
    %cst_25 = arith.constant dense<0.000000e+00> : vector<16x8xf32>
    %83 = tpu.matmul %81, %82, %cst_25 {dimension_numbers = #tpu.dot_dimension_numbers<[1], [0], [0], [1], [0, 0, 1, 1], [], []>} : vector<16x16xbf16>, vector<16x8xbf16>, vector<16x8xf32> -> vector<16x8xf32>
    %cst_26 = arith.constant dense<0.000000e+00> : vector<16xf32>
    %84 = vector.multi_reduction <add>, %80, %cst_26 [1] : vector<16x16xf32> to vector<16xf32>
    %85 = vector.shape_cast %84 : vector<16xf32> to vector<16x1xf32>
    %86 = tpu.reciprocal %85 {approx = true} : vector<16x1xf32> -> vector<16x1xf32>
    %87 = vector.broadcast %86 : vector<16x1xf32> to vector<16x8xf32>
    %88 = arith.mulf %83, %87 : vector<16x8xf32>
    %c0_27 = arith.constant 0 : index
    %c24 = arith.constant 24 : index
    %89 = vector.load %arg4[%c0_27, %c24] : memref<16x32xf32, #tpu.memory_space<vmem>>, vector<16x8xf32>
    tpu.vector_store %arg4[%c0_27, %c24], %88 {strides = array<i32>} : memref<16x32xf32, #tpu.memory_space<vmem>>, vector<16x8xf32>,
    %c0_28 = arith.constant 0 : index
    %c0_29 = arith.constant 0 : index
    %90 = vector.load %arg4[%c0_28, %c0_29] : memref<16x32xf32, #tpu.memory_space<vmem>>, vector<16x32xf32>
    %91 = arith.truncf %90 : vector<16x32xf32> to vector<16x32xbf16>
    %92 = arith.truncf %2 : vector<32x32xf32> to vector<32x32xbf16>
    %cst_30 = arith.constant dense<0.000000e+00> : vector<16x32xf32>
    %93 = tpu.matmul %91, %92, %cst_30 {dimension_numbers = #tpu.dot_dimension_numbers<[1], [0], [0], [1], [0, 0, 1, 1], [], []>} : vector<16x32xbf16>, vector<32x32xbf16>, vector<16x32xf32> -> vector<16x32xf32>
    %94 = vector.broadcast %4 : vector<1x32xf32> to vector<16x32xf32>
    %95 = arith.addf %93, %94 : vector<16x32xf32>
    %c0_31 = arith.constant 0 : index
    %c0_32 = arith.constant 0 : index
    %96 = vector.load %arg3[%c0_31, %c0_32] : memref<16x32xf32, #tpu.memory_space<vmem>>, vector<16x32xf32>
    tpu.vector_store %arg3[%c0_31, %c0_32], %95 {strides = array<i32>} : memref<16x32xf32, #tpu.memory_space<vmem>>, vector<16x32xf32>,
    return
  }
  func.func @transform_0(%arg0: i32) -> (i32, i32) {
    %c0_i32 = arith.constant 0 : i32
    %c0_i32_0 = arith.constant 0 : i32
    %c0_i32_1 = arith.constant 0 : i32
    return %c0_i32, %c0_i32_0 : i32, i32
  }
  func.func @transform_1(%arg0: i32) -> (i32, i32) {
    %c0_i32 = arith.constant 0 : i32
    %c0_i32_0 = arith.constant 0 : i32
    %c0_i32_1 = arith.constant 0 : i32
    return %c0_i32, %c0_i32_0 : i32, i32
  }
  func.func @transform_2(%arg0: i32) -> (i32, i32) {
    %c0_i32 = arith.constant 0 : i32
    %c0_i32_0 = arith.constant 0 : i32
    %c0_i32_1 = arith.constant 0 : i32
    return %c0_i32, %c0_i32_0 : i32, i32
  }
}

</mosaic_0001>

<llo_original>
// kernel: tpu_custom_call.1
$region0: #{tpu_custom_call.1}
  #allocation0 [shape = 'u32[]', space=smem, size = 0x4, offset = 0x4, fixed_abs, tag = 'smem constant byte address 0x4 - core index']
  #allocation1 [shape = 'u32[144,128]{1,0:T(1,128)}', space=vmem, size = 0x12000, scoped, tag = 'internal scratch']
  #allocation2 [shape = 'f32[16,32]{1,0:T(8,128)}', space=vmem, size = 0x2000, scoped, tag = 'scratch operand']
  %s0 = inlined_call_operand.hbm [shape: f32[16,32], index: 0, kind: input, shape index: {}]
  %s1 = inlined_call_operand.hbm [shape: f32[88,128], index: 1, kind: input, shape index: {}]
  %s2 = inlined_call_operand.hbm [shape: f32[16,32], index: 2, kind: output, shape index: {}]
  %s3 = sld [smem:[#allocation0]]
  $region26: #{tpu_custom_call.1} parent=0
    _
  %s5 = ssub.s32 1, %s3
  %s6 = scalar_select 0, %s5, %s3
  $region1: #{tpu_custom_call.1} parent=0
    #allocation3 [shape = 'u8[8192]{0}', space=vmem, size = 0x2000, scoped, tag = 'input window, operand 0, single buffered']
    #allocation4 [shape = 's32[1]{0}', space=sflag, size = 0x4, scoped, tag = 'scoped memory for tpu_custom_call.1']
    #allocation5 [shape = 's32[1]{0}', space=sflag, size = 0x4, scoped, tag = 'scoped memory for tpu_custom_call.1']
    #allocation6 [shape = 'u8[45056]{0}', space=vmem, size = 0xb000, scoped, tag = 'input window, operand 1, single buffered']
    #allocation7 [shape = 's32[1]{0}', space=sflag, size = 0x4, scoped, tag = 'scoped memory for tpu_custom_call.1']
    #allocation8 [shape = 'u8[8192]{0}', space=vmem, size = 0x2000, scoped, tag = 'output window, operand 0, single buffered']
    %7 = vsyncpa [#allocation4], 0
    %8 = vsyncpa [#allocation7], 0
    %9 = vsyncpa [#allocation5], 0
    // Predicated region
    $region2: #{tpu_custom_call.1} parent=1 // pred_check
      _
    $region3: #{tpu_custom_call.1} parent=1 // pred_check_branch
      %11 = sbr.rel (0) target = $region5
    $region4: #{tpu_custom_call.1} parent=1 // pred_region
      %s13 = ssub.s32 256, 256
      %14 = vsyncadd [#allocation4], %s13
      %s15 = sshll.u32 [#allocation3], 4
      %s16 = int_to_ptr.vmem [resolvable:$true] %s15
      %21 = dma.hbm_to_vmem [thread:$0]  %s0, 256, %s16, [#allocation4], 128, 128, 8
    $region5: #{tpu_custom_call.1} parent=1 // pred_fallthru
      _
    // Predicated region
    $region6: #{tpu_custom_call.1} parent=1 // pred_check
      _
    $region7: #{tpu_custom_call.1} parent=1 // pred_check_branch
      %23 = sbr.rel (0) target = $region9
    $region8: #{tpu_custom_call.1} parent=1 // pred_region
      %s25 = ssub.s32 1408, 1408
      %26 = vsyncadd [#allocation7], %s25
      %s27 = sshll.u32 [#allocation6], 4
      %s28 = int_to_ptr.vmem [resolvable:$true] %s27
      %33 = dma.hbm_to_vmem [thread:$0]  %s1, 1408, %s28, [#allocation7], 128, 128, 8
    $region9: #{tpu_custom_call.1} parent=1 // pred_fallthru
      _
    // Predicated region
    $region10: #{tpu_custom_call.1} parent=1 // pred_check
      _
    $region11: #{tpu_custom_call.1} parent=1 // pred_check_branch
      %35 = sbr.rel (0) target = $region13
    $region12: #{tpu_custom_call.1} parent=1 // pred_region
      %36 = dma.done [#allocation4], 256
    $region13: #{tpu_custom_call.1} parent=1 // pred_fallthru
      _
    // Predicated region
    $region14: #{tpu_custom_call.1} parent=1 // pred_check
      _
    $region15: #{tpu_custom_call.1} parent=1 // pred_check_branch
      %38 = sbr.rel (0) target = $region17
    $region16: #{tpu_custom_call.1} parent=1 // pred_region
      %39 = dma.done [#allocation7], 1408
    $region17: #{tpu_custom_call.1} parent=1 // pred_fallthru
      _
    %v41 = vld [vmem:[#allocation3] sm:$0xff]
    %v42 = vld [vmem:[#allocation3 + $0x8] sm:$0xff]
    %v43 = vld [vmem:[#allocation6] sm:$0xff]
    %v44 = vld [vmem:[#allocation6 + $0x8] sm:$0xff]
    %v45 = vld [vmem:[#allocation6 + $0x10] sm:$0xff]
    %v46 = vld [vmem:[#allocation6 + $0x18] sm:$0xff]
    %v47 = vld [vmem:[#allocation6 + $0x20] sm:$0xff]
    %v48 = vld [vmem:[#allocation6 + $0x28] sm:$0xff]
    %v49 = vld [vmem:[#allocation6 + $0x30] sm:$0xff]
    %v50 = vld [vmem:[#allocation6 + $0x38] sm:$0xff]
    %v51 = vld [vmem:[#allocation6 + $0x40] sm:$0x1]
    %v52 = vld [vmem:[#allocation6 + $0x41] sm:$0x1]
    %v53 = vld [vmem:[#allocation6 + $0x48] sm:$0xff]
    %v54 = vld [vmem:[#allocation6 + $0x50] sm:$0xff]
    %v55 = vpack.c.bf16 %v42, %v41
    %v56 = vpack.c.bf16 %v44, %v43
    %v57 = vpack.c.bf16 %v46, %v45
    %v58 = vlaneseq
    %v59 = vshrl.u32 %v58, 7
    %v60 = vsub.s32 0, %v59
    %v61 = vrot.slane %v51, %v60
    %vm62 = vcmask 261120
    %v64 = vsel %vm62, %v55, 0
    %66 = vmatprep.subr.bf16.mxu0 0
    %67 = vmatpush1.bf16.msra.mxu0 0
    %68 = vmatprep.subr.bf16.mxu0 0
    %69 = vmatpush1.bf16.msra.mxu0 0
    %70 = vmatprep.subr.bf16.mxu0 0
    %71 = vmatpush1.bf16.msra.mxu0 0
    %72 = vmatprep.subr.bf16.mxu0 0
    %73 = vmatpush1.bf16.msra.mxu0 0
    %74 = vmatprep.subr.bf16.mxu0 0
    %75 = vmatpush1.bf16.msra.mxu0 0
    %76 = vmatprep.subr.bf16.mxu0 0
    %77 = vmatpush1.bf16.msra.mxu0 0
    %78 = vmatprep.subr.bf16.mxu0 0
    %79 = vmatpush1.bf16.msra.mxu0 %v57
    %80 = vmatprep.subr.bf16.mxu0 0
    %81 = vmatpush1.bf16.msra.mxu0 %v56
    %82 = vmatprep.subr.bf16.mxu0 0
    %83 = vmatpush2.bf16.msra.mxu0 0
    %84 = vmatprep.subr.bf16.mxu0 0
    %85 = vmatpush2.bf16.msra.mxu0 0
    %86 = vmatprep.subr.bf16.mxu0 0
    %87 = vmatpush2.bf16.msra.mxu0 0
    %88 = vmatprep.subr.bf16.mxu0 0
    %89 = vmatpush2.bf16.msra.mxu0 0
    %90 = vmatprep.subr.bf16.mxu0 0
    %91 = vmatpush2.bf16.msra.mxu0 0
    %92 = vmatprep.subr.bf16.mxu0 0
    %93 = vmatpush2.bf16.msra.mxu0 0
    %94 = vmatprep.subr.bf16.mxu0 0
    %95 = vmatpush2.bf16.msra.mxu0 0
    %96 = vmatprep.subr.bf16.mxu0 0
    %97 = vmatpush2.bf16.msra.mxu0 0
    %98 = vmatprep.mubr.bf16.mxu0 0
    %99 = vmatmul.mubr.bf16.gmra.mxu0 %v64
    %v100 = vpop.f32.mrf.mxu0
    %v101 = vadd.f32 %v61, %v100
    %v102 = vpop.f32.mrf.mxu0
    %v103 = vpop.f32.mrf.mxu0
    %v104 = vadd.f32 %v61, %v103
    %v105 = vpop.f32.mrf.mxu0
    %106 = vdwg.mxu0
    %109 = vrot.lane.b32.xlu0 %v101, 96
    %v110 = vpop.permute.xlu0 %109
    %111 = vrot.lane.b32.xlu0 %v104, 96
    %v112 = vpop.permute.xlu0 %111
    %vm113 = vcmask 64512
    %v114 = vsel %vm113, %v101, 0
    %v116 = vsel %vm113, %v104, 0
    %v118 = vsel %vm113, %v110, 0
    %v120 = vsel %vm113, %v112, 0
    %122 = vmatprep.subr.mxu0 0.0
    %123 = vmatpush1.xpose.msra.mxu0 0.0
    %124 = vmatprep.subr.mxu0 0.0
    %125 = vmatpush1.xpose.msra.mxu0 0.0
    %126 = vmatprep.subr.mxu0 0.0
    %127 = vmatpush1.xpose.msra.mxu0 0.0
    %128 = vmatprep.subr.mxu0 0.0
    %129 = vmatpush1.xpose.msra.mxu0 0.0
    %130 = vmatprep.subr.mxu0 0.0
    %131 = vmatpush1.xpose.msra.mxu0 0.0
    %132 = vmatprep.subr.mxu0 0.0
    %133 = vmatpush1.xpose.msra.mxu0 0.0
    %134 = vmatprep.subr.mxu0 0.0
    %135 = vmatpush1.xpose.msra.mxu0 0.0
    %136 = vmatprep.subr.mxu0 0.0
    %137 = vmatpush1.xpose.msra.mxu0 0.0
    %138 = vmatprep.subr.mxu0 0.0
    %139 = vmatpush1.xpose.msra.mxu0 0.0
    %140 = vmatprep.subr.mxu0 0.0
    %141 = vmatpush1.xpose.msra.mxu0 0.0
    %142 = vmatprep.subr.mxu0 0.0
    %143 = vmatpush1.xpose.msra.mxu0 0.0
    %144 = vmatprep.subr.mxu0 0.0
    %145 = vmatpush1.xpose.msra.mxu0 0.0
    %146 = vmatprep.subr.mxu0 0.0
    %147 = vmatpush1.xpose.msra.mxu0 0.0
    %148 = vmatprep.subr.mxu0 0.0
    %149 = vmatpush1.xpose.msra.mxu0 0.0
    %150 = vmatprep.subr.mxu0 0.0
    %151 = vmatpush1.xpose.msra.mxu0 %v120
    %152 = vmatprep.subr.mxu0 0.0
    %153 = vmatpush1.xpose.msra.mxu0 %v118
    %154 = vmatprep.subr.mxu0 0.0
    %155 = vmatpush2.xpose.msra.mxu0 0.0
    %156 = vmatprep.subr.mxu0 0.0
    %157 = vmatpush2.xpose.msra.mxu0 0.0
    %158 = vmatprep.subr.mxu0 0.0
    %159 = vmatpush2.xpose.msra.mxu0 0.0
    %160 = vmatprep.subr.mxu0 0.0
    %161 = vmatpush2.xpose.msra.mxu0 0.0
    %162 = vmatprep.subr.mxu0 0.0
    %163 = vmatpush2.xpose.msra.mxu0 0.0
    %164 = vmatprep.subr.mxu0 0.0
    %165 = vmatpush2.xpose.msra.mxu0 0.0
    %166 = vmatprep.subr.mxu0 0.0
    %167 = vmatpush2.xpose.msra.mxu0 0.0
    %168 = vmatprep.subr.mxu0 0.0
    %169 = vmatpush2.xpose.msra.mxu0 0.0
    %170 = vmatprep.subr.mxu0 0.0
    %171 = vmatpush2.xpose.msra.mxu0 0.0
    %172 = vmatprep.subr.mxu0 0.0
    %173 = vmatpush2.xpose.msra.mxu0 0.0
    %174 = vmatprep.subr.mxu0 0.0
    %175 = vmatpush2.xpose.msra.mxu0 0.0
    %176 = vmatprep.subr.mxu0 0.0
    %177 = vmatpush2.xpose.msra.mxu0 0.0
    %178 = vmatprep.subr.mxu0 0.0
    %179 = vmatpush2.xpose.msra.mxu0 0.0
    %180 = vmatprep.subr.mxu0 0.0
    %181 = vmatpush2.xpose.msra.mxu0 0.0
    %182 = vmatprep.subr.mxu0 0.0
    %183 = vmatpush2.xpose.msra.mxu0 0.0
    %184 = vmatprep.subr.mxu0 0.0
    %185 = vmatpush2.xpose.msra.mxu0 0.0
    %186 = vmatprep.mubr.f32.mxu0 0.0
    %187 = vmatmul.mubr.f32.gmra.mxu0 %v114
    %v188 = vpop.f32.mrf.mxu0
    %v189 = vadd.f32 %v53, %v188
    %v190 = vpop.f32.mrf.mxu0
    %191 = vmatprep.mubr.f32.mxu0 0.0
    %192 = vmatmul.mubr.f32.gmra.mxu0 %v116
    %v193 = vpop.f32.mrf.mxu0
    %v194 = vadd.f32 %v54, %v193
    %v195 = vpop.f32.mrf.mxu0
    %196 = vdwg.mxu0
    %vm197 = vcmask 130048
    %v198 = vsel %vm197, %v189, -inf
    %199 = vmax.xlane.f32.xlu0 %v198
    %v200 = vpop.xlane.xlu0 %199
    %v201 = vsel %vm197, %v194, -inf
    %202 = vmax.xlane.f32.xlu0 %v201
    %v203 = vpop.xlane.xlu0 %202
    %v204 = vsub.f32 %v189, %v200
    %v205 = vsub.f32 %v194, %v203
    %v206 = vmul.f32 %v204, 1.442695
    %v207 = vpow.pop %v206
    %v208 = vmul.f32 %v205, 1.442695
    %v209 = vpow.pop %v208
    %v210 = vpack.c.bf16 %v209, %v207
    %v211 = vpack.c.bf16 %v104, %v101
    %213 = vrot.lane.b32.xlu0 %v211, 64
    %v214 = vpop.permute.xlu0 %213
    %v217 = vsel %vm197, %v210, 0
    %219 = vmatprep.subr.bf16.mxu0 0
    %220 = vmatpush1.bf16.msra.mxu0 0
    %221 = vmatprep.subr.bf16.mxu0 0
    %222 = vmatpush1.bf16.msra.mxu0 0
    %223 = vmatprep.subr.bf16.mxu0 0
    %224 = vmatpush1.bf16.msra.mxu0 0
    %225 = vmatprep.subr.bf16.mxu0 0
    %226 = vmatpush1.bf16.msra.mxu0 0
    %227 = vmatprep.subr.bf16.mxu0 0
    %228 = vmatpush1.bf16.msra.mxu0 0
    %229 = vmatprep.subr.bf16.mxu0 0
    %230 = vmatpush1.bf16.msra.mxu0 0
    %231 = vmatprep.subr.bf16.mxu0 0
    %232 = vmatpush1.bf16.msra.mxu0 0
    %233 = vmatprep.subr.bf16.mxu0 0
    %234 = vmatpush1.bf16.msra.mxu0 %v214
    %235 = vmatprep.subr.bf16.mxu0 0
    %236 = vmatpush2.bf16.msra.mxu0 0
    %237 = vmatprep.subr.bf16.mxu0 0
    %238 = vmatpush2.bf16.msra.mxu0 0
    %239 = vmatprep.subr.bf16.mxu0 0
    %240 = vmatpush2.bf16.msra.mxu0 0
    %241 = vmatprep.subr.bf16.mxu0 0
    %242 = vmatpush2.bf16.msra.mxu0 0
    %243 = vmatprep.subr.bf16.mxu0 0
    %244 = vmatpush2.bf16.msra.mxu0 0
    %245 = vmatprep.subr.bf16.mxu0 0
    %246 = vmatpush2.bf16.msra.mxu0 0
    %247 = vmatprep.subr.bf16.mxu0 0
    %248 = vmatpush2.bf16.msra.mxu0 0
    %249 = vmatprep.subr.bf16.mxu0 0
    %250 = vmatpush2.bf16.msra.mxu0 0
    %251 = vmatprep.mubr.bf16.mxu0 0
    %252 = vmatmul.mubr.bf16.gmra.mxu0 %v217
    %v253 = vpop.f32.mrf.mxu0
    %v254 = vadd.f32 0.0, %v253
    %v255 = vpop.f32.mrf.mxu0
    %v256 = vpop.f32.mrf.mxu0
    %v257 = vadd.f32 0.0, %v256
    %v258 = vpop.f32.mrf.mxu0
    %259 = vdwg.mxu0
    %v260 = vsel %vm197, %v207, 0.0
    %261 = vadd.xlane.f32.xlu0 %v260
    %v262 = vpop.xlane.xlu0 %261
    %v263 = vsel %vm197, %v209, 0.0
    %264 = vadd.xlane.f32.xlu0 %v263
    %v265 = vpop.xlane.xlu0 %264
    %v266 = vrcp.pop %v262
    %v267 = vrcp.pop %v265
    %v268 = vmul.f32 %v254, %v266
    %v269 = vmul.f32 %v257, %v267
    %270 = vst.msk [vmem:[#allocation2] sm:$0xff] %vm113, %v268
    %271 = vst.msk [vmem:[#allocation2 + $0x8] sm:$0xff] %vm113, %v269
    %272 = vrot.lane.b32.xlu0 %v101, 120
    %v273 = vpop.permute.xlu0 %272
    %274 = vrot.lane.b32.xlu0 %v104, 120
    %v275 = vpop.permute.xlu0 %274
    %276 = vrot.lane.b32.xlu0 %v101, 88
    %v277 = vpop.permute.xlu0 %276
    %278 = vrot.lane.b32.xlu0 %v104, 88
    %v279 = vpop.permute.xlu0 %278
    %v280 = vsel %vm113, %v273, 0
    %v282 = vsel %vm113, %v275, 0
    %v284 = vsel %vm113, %v277, 0
    %v286 = vsel %vm113, %v279, 0
    %288 = vmatprep.subr.mxu0 0.0
    %289 = vmatpush1.xpose.msra.mxu0 0.0
    %290 = vmatprep.subr.mxu0 0.0
    %291 = vmatpush1.xpose.msra.mxu0 0.0
    %292 = vmatprep.subr.mxu0 0.0
    %293 = vmatpush1.xpose.msra.mxu0 0.0
    %294 = vmatprep.subr.mxu0 0.0
    %295 = vmatpush1.xpose.msra.mxu0 0.0
    %296 = vmatprep.subr.mxu0 0.0
    %297 = vmatpush1.xpose.msra.mxu0 0.0
    %298 = vmatprep.subr.mxu0 0.0
    %299 = vmatpush1.xpose.msra.mxu0 0.0
    %300 = vmatprep.subr.mxu0 0.0
    %301 = vmatpush1.xpose.msra.mxu0 0.0
    %302 = vmatprep.subr.mxu0 0.0
    %303 = vmatpush1.xpose.msra.mxu0 0.0
    %304 = vmatprep.subr.mxu0 0.0
    %305 = vmatpush1.xpose.msra.mxu0 0.0
    %306 = vmatprep.subr.mxu0 0.0
    %307 = vmatpush1.xpose.msra.mxu0 0.0
    %308 = vmatprep.subr.mxu0 0.0
    %309 = vmatpush1.xpose.msra.mxu0 0.0
    %310 = vmatprep.subr.mxu0 0.0
    %311 = vmatpush1.xpose.msra.mxu0 0.0
    %312 = vmatprep.subr.mxu0 0.0
    %313 = vmatpush1.xpose.msra.mxu0 0.0
    %314 = vmatprep.subr.mxu0 0.0
    %315 = vmatpush1.xpose.msra.mxu0 0.0
    %316 = vmatprep.subr.mxu0 0.0
    %317 = vmatpush1.xpose.msra.mxu0 %v286
    %318 = vmatprep.subr.mxu0 0.0
    %319 = vmatpush1.xpose.msra.mxu0 %v284
    %320 = vmatprep.subr.mxu0 0.0
    %321 = vmatpush2.xpose.msra.mxu0 0.0
    %322 = vmatprep.subr.mxu0 0.0
    %323 = vmatpush2.xpose.msra.mxu0 0.0
    %324 = vmatprep.subr.mxu0 0.0
    %325 = vmatpush2.xpose.msra.mxu0 0.0
    %326 = vmatprep.subr.mxu0 0.0
    %327 = vmatpush2.xpose.msra.mxu0 0.0
    %328 = vmatprep.subr.mxu0 0.0
    %329 = vmatpush2.xpose.msra.mxu0 0.0
    %330 = vmatprep.subr.mxu0 0.0
    %331 = vmatpush2.xpose.msra.mxu0 0.0
    %332 = vmatprep.subr.mxu0 0.0
    %333 = vmatpush2.xpose.msra.mxu0 0.0
    %334 = vmatprep.subr.mxu0 0.0
    %335 = vmatpush2.xpose.msra.mxu0 0.0
    %336 = vmatprep.subr.mxu0 0.0
    %337 = vmatpush2.xpose.msra.mxu0 0.0
    %338 = vmatprep.subr.mxu0 0.0
    %339 = vmatpush2.xpose.msra.mxu0 0.0
    %340 = vmatprep.subr.mxu0 0.0
    %341 = vmatpush2.xpose.msra.mxu0 0.0
    %342 = vmatprep.subr.mxu0 0.0
    %343 = vmatpush2.xpose.msra.mxu0 0.0
    %344 = vmatprep.subr.mxu0 0.0
    %345 = vmatpush2.xpose.msra.mxu0 0.0
    %346 = vmatprep.subr.mxu0 0.0
    %347 = vmatpush2.xpose.msra.mxu0 0.0
    %348 = vmatprep.subr.mxu0 0.0
    %349 = vmatpush2.xpose.msra.mxu0 0.0
    %350 = vmatprep.subr.mxu0 0.0
    %351 = vmatpush2.xpose.msra.mxu0 0.0
    %352 = vmatprep.mubr.f32.mxu0 0.0
    %353 = vmatmul.mubr.f32.gmra.mxu0 %v280
    %v354 = vpop.f32.mrf.mxu0
    %v355 = vadd.f32 %v53, %v354
    %v356 = vpop.f32.mrf.mxu0
    %357 = vmatprep.mubr.f32.mxu0 0.0
    %358 = vmatmul.mubr.f32.gmra.mxu0 %v282
    %v359 = vpop.f32.mrf.mxu0
    %v360 = vadd.f32 %v54, %v359
    %v361 = vpop.f32.mrf.mxu0
    %362 = vdwg.mxu0
    %v363 = vsel %vm197, %v355, -inf
    %364 = vmax.xlane.f32.xlu0 %v363
    %v365 = vpop.xlane.xlu0 %364
    %v366 = vsel %vm197, %v360, -inf
    %367 = vmax.xlane.f32.xlu0 %v366
    %v368 = vpop.xlane.xlu0 %367
    %v369 = vsub.f32 %v355, %v365
    %v370 = vsub.f32 %v360, %v368
    %v371 = vmul.f32 %v369, 1.442695
    %v372 = vpow.pop %v371
    %v373 = vmul.f32 %v370, 1.442695
    %v374 = vpow.pop %v373
    %v375 = vpack.c.bf16 %v374, %v372
    %376 = vrot.lane.b32.xlu0 %v211, 56
    %v377 = vpop.permute.xlu0 %376
    %v380 = vsel %vm197, %v375, 0
    %382 = vmatprep.subr.bf16.mxu0 0
    %383 = vmatpush1.bf16.msra.mxu0 0
    %384 = vmatprep.subr.bf16.mxu0 0
    %385 = vmatpush1.bf16.msra.mxu0 0
    %386 = vmatprep.subr.bf16.mxu0 0
    %387 = vmatpush1.bf16.msra.mxu0 0
    %388 = vmatprep.subr.bf16.mxu0 0
    %389 = vmatpush1.bf16.msra.mxu0 0
    %390 = vmatprep.subr.bf16.mxu0 0
    %391 = vmatpush1.bf16.msra.mxu0 0
    %392 = vmatprep.subr.bf16.mxu0 0
    %393 = vmatpush1.bf16.msra.mxu0 0
    %394 = vmatprep.subr.bf16.mxu0 0
    %395 = vmatpush1.bf16.msra.mxu0 0
    %396 = vmatprep.subr.bf16.mxu0 0
    %397 = vmatpush1.bf16.msra.mxu0 %v377
    %398 = vmatprep.subr.bf16.mxu0 0
    %399 = vmatpush2.bf16.msra.mxu0 0
    %400 = vmatprep.subr.bf16.mxu0 0
    %401 = vmatpush2.bf16.msra.mxu0 0
    %402 = vmatprep.subr.bf16.mxu0 0
    %403 = vmatpush2.bf16.msra.mxu0 0
    %404 = vmatprep.subr.bf16.mxu0 0
    %405 = vmatpush2.bf16.msra.mxu0 0
    %406 = vmatprep.subr.bf16.mxu0 0
    %407 = vmatpush2.bf16.msra.mxu0 0
    %408 = vmatprep.subr.bf16.mxu0 0
    %409 = vmatpush2.bf16.msra.mxu0 0
    %410 = vmatprep.subr.bf16.mxu0 0
    %411 = vmatpush2.bf16.msra.mxu0 0
    %412 = vmatprep.subr.bf16.mxu0 0
    %413 = vmatpush2.bf16.msra.mxu0 0
    %414 = vmatprep.mubr.bf16.mxu0 0
    %415 = vmatmul.mubr.bf16.gmra.mxu0 %v380
    %v416 = vpop.f32.mrf.mxu0
    %v417 = vadd.f32 0.0, %v416
    %v418 = vpop.f32.mrf.mxu0
    %v419 = vpop.f32.mrf.mxu0
    %v420 = vadd.f32 0.0, %v419
    %v421 = vpop.f32.mrf.mxu0
    %422 = vdwg.mxu0
    %v423 = vsel %vm197, %v372, 0.0
    %424 = vadd.xlane.f32.xlu0 %v423
    %v425 = vpop.xlane.xlu0 %424
    %v426 = vsel %vm197, %v374, 0.0
    %427 = vadd.xlane.f32.xlu0 %v426
    %v428 = vpop.xlane.xlu0 %427
    %v429 = vrcp.pop %v425
    %v430 = vrcp.pop %v428
    %v431 = vmul.f32 %v417, %v429
    %v432 = vmul.f32 %v420, %v430
    %435 = vrot.lane.b32.xlu0 %v431, 8
    %v436 = vpop.permute.xlu0 %435
    %437 = vrot.lane.b32.xlu0 %v432, 8
    %v438 = vpop.permute.xlu0 %437
    %vm441 = vcmask 130112
    %442 = vst.msk [vmem:[#allocation2] sm:$0xff] %vm441, %v436
    %443 = vst.msk [vmem:[#allocation2 + $0x8] sm:$0xff] %vm441, %v438
    %444 = vrot.lane.b32.xlu0 %v101, 112
    %v445 = vpop.permute.xlu0 %444
    %446 = vrot.lane.b32.xlu0 %v104, 112
    %v447 = vpop.permute.xlu0 %446
    %448 = vrot.lane.b32.xlu0 %v101, 80
    %v449 = vpop.permute.xlu0 %448
    %450 = vrot.lane.b32.xlu0 %v104, 80
    %v451 = vpop.permute.xlu0 %450
    %v452 = vsel %vm113, %v445, 0
    %v454 = vsel %vm113, %v447, 0
    %v456 = vsel %vm113, %v449, 0
    %v458 = vsel %vm113, %v451, 0
    %460 = vmatprep.subr.mxu0 0.0
    %461 = vmatpush1.xpose.msra.mxu0 0.0
    %462 = vmatprep.subr.mxu0 0.0
    %463 = vmatpush1.xpose.msra.mxu0 0.0
    %464 = vmatprep.subr.mxu0 0.0
    %465 = vmatpush1.xpose.msra.mxu0 0.0
    %466 = vmatprep.subr.mxu0 0.0
    %467 = vmatpush1.xpose.msra.mxu0 0.0
    %468 = vmatprep.subr.mxu0 0.0
    %469 = vmatpush1.xpose.msra.mxu0 0.0
    %470 = vmatprep.subr.mxu0 0.0
    %471 = vmatpush1.xpose.msra.mxu0 0.0
    %472 = vmatprep.subr.mxu0 0.0
    %473 = vmatpush1.xpose.msra.mxu0 0.0
    %474 = vmatprep.subr.mxu0 0.0
    %475 = vmatpush1.xpose.msra.mxu0 0.0
    %476 = vmatprep.subr.mxu0 0.0
    %477 = vmatpush1.xpose.msra.mxu0 0.0
    %478 = vmatprep.subr.mxu0 0.0
    %479 = vmatpush1.xpose.msra.mxu0 0.0
    %480 = vmatprep.subr.mxu0 0.0
    %481 = vmatpush1.xpose.msra.mxu0 0.0
    %482 = vmatprep.subr.mxu0 0.0
    %483 = vmatpush1.xpose.msra.mxu0 0.0
    %484 = vmatprep.subr.mxu0 0.0
    %485 = vmatpush1.xpose.msra.mxu0 0.0
    %486 = vmatprep.subr.mxu0 0.0
    %487 = vmatpush1.xpose.msra.mxu0 0.0
    %488 = vmatprep.subr.mxu0 0.0
    %489 = vmatpush1.xpose.msra.mxu0 %v458
    %490 = vmatprep.subr.mxu0 0.0
    %491 = vmatpush1.xpose.msra.mxu0 %v456
    %492 = vmatprep.subr.mxu0 0.0
    %493 = vmatpush2.xpose.msra.mxu0 0.0
    %494 = vmatprep.subr.mxu0 0.0
    %495 = vmatpush2.xpose.msra.mxu0 0.0
    %496 = vmatprep.subr.mxu0 0.0
    %497 = vmatpush2.xpose.msra.mxu0 0.0
    %498 = vmatprep.subr.mxu0 0.0
    %499 = vmatpush2.xpose.msra.mxu0 0.0
    %500 = vmatprep.subr.mxu0 0.0
    %501 = vmatpush2.xpose.msra.mxu0 0.0
    %502 = vmatprep.subr.mxu0 0.0
    %503 = vmatpush2.xpose.msra.mxu0 0.0
    %504 = vmatprep.subr.mxu0 0.0
    %505 = vmatpush2.xpose.msra.mxu0 0.0
    %506 = vmatprep.subr.mxu0 0.0
    %507 = vmatpush2.xpose.msra.mxu0 0.0
    %508 = vmatprep.subr.mxu0 0.0
    %509 = vmatpush2.xpose.msra.mxu0 0.0
    %510 = vmatprep.subr.mxu0 0.0
    %511 = vmatpush2.xpose.msra.mxu0 0.0
    %512 = vmatprep.subr.mxu0 0.0
    %513 = vmatpush2.xpose.msra.mxu0 0.0
    %514 = vmatprep.subr.mxu0 0.0
    %515 = vmatpush2.xpose.msra.mxu0 0.0
    %516 = vmatprep.subr.mxu0 0.0
    %517 = vmatpush2.xpose.msra.mxu0 0.0
    %518 = vmatprep.subr.mxu0 0.0
    %519 = vmatpush2.xpose.msra.mxu0 0.0
    %520 = vmatprep.subr.mxu0 0.0
    %521 = vmatpush2.xpose.msra.mxu0 0.0
    %522 = vmatprep.subr.mxu0 0.0
    %523 = vmatpush2.xpose.msra.mxu0 0.0
    %524 = vmatprep.mubr.f32.mxu0 0.0
    %525 = vmatmul.mubr.f32.gmra.mxu0 %v452
    %v526 = vpop.f32.mrf.mxu0
    %v527 = vadd.f32 %v53, %v526
    %v528 = vpop.f32.mrf.mxu0
    %529 = vmatprep.mubr.f32.mxu0 0.0
    %530 = vmatmul.mubr.f32.gmra.mxu0 %v454
    %v531 = vpop.f32.mrf.mxu0
    %v532 = vadd.f32 %v54, %v531
    %v533 = vpop.f32.mrf.mxu0
    %534 = vdwg.mxu0
    %v535 = vsel %vm197, %v527, -inf
    %536 = vmax.xlane.f32.xlu0 %v535
    %v537 = vpop.xlane.xlu0 %536
    %v538 = vsel %vm197, %v532, -inf
    %539 = vmax.xlane.f32.xlu0 %v538
    %v540 = vpop.xlane.xlu0 %539
    %v541 = vsub.f32 %v527, %v537
    %v542 = vsub.f32 %v532, %v540
    %v543 = vmul.f32 %v541, 1.442695
    %v544 = vpow.pop %v543
    %v545 = vmul.f32 %v542, 1.442695
    %v546 = vpow.pop %v545
    %v547 = vpack.c.bf16 %v546, %v544
    %548 = vrot.lane.b32.xlu0 %v211, 48
    %v549 = vpop.permute.xlu0 %548
    %v552 = vsel %vm197, %v547, 0
    %554 = vmatprep.subr.bf16.mxu0 0
    %555 = vmatpush1.bf16.msra.mxu0 0
    %556 = vmatprep.subr.bf16.mxu0 0
    %557 = vmatpush1.bf16.msra.mxu0 0
    %558 = vmatprep.subr.bf16.mxu0 0
    %559 = vmatpush1.bf16.msra.mxu0 0
    %560 = vmatprep.subr.bf16.mxu0 0
    %561 = vmatpush1.bf16.msra.mxu0 0
    %562 = vmatprep.subr.bf16.mxu0 0
    %563 = vmatpush1.bf16.msra.mxu0 0
    %564 = vmatprep.subr.bf16.mxu0 0
    %565 = vmatpush1.bf16.msra.mxu0 0
    %566 = vmatprep.subr.bf16.mxu0 0
    %567 = vmatpush1.bf16.msra.mxu0 0
    %568 = vmatprep.subr.bf16.mxu0 0
    %569 = vmatpush1.bf16.msra.mxu0 %v549
    %570 = vmatprep.subr.bf16.mxu0 0
    %571 = vmatpush2.bf16.msra.mxu0 0
    %572 = vmatprep.subr.bf16.mxu0 0
    %573 = vmatpush2.bf16.msra.mxu0 0
    %574 = vmatprep.subr.bf16.mxu0 0
    %575 = vmatpush2.bf16.msra.mxu0 0
    %576 = vmatprep.subr.bf16.mxu0 0
    %577 = vmatpush2.bf16.msra.mxu0 0
    %578 = vmatprep.subr.bf16.mxu0 0
    %579 = vmatpush2.bf16.msra.mxu0 0
    %580 = vmatprep.subr.bf16.mxu0 0
    %581 = vmatpush2.bf16.msra.mxu0 0
    %582 = vmatprep.subr.bf16.mxu0 0
    %583 = vmatpush2.bf16.msra.mxu0 0
    %584 = vmatprep.subr.bf16.mxu0 0
    %585 = vmatpush2.bf16.msra.mxu0 0
    %586 = vmatprep.mubr.bf16.mxu0 0
    %587 = vmatmul.mubr.bf16.gmra.mxu0 %v552
    %v588 = vpop.f32.mrf.mxu0
    %v589 = vadd.f32 0.0, %v588
    %v590 = vpop.f32.mrf.mxu0
    %v591 = vpop.f32.mrf.mxu0
    %v592 = vadd.f32 0.0, %v591
    %v593 = vpop.f32.mrf.mxu0
    %594 = vdwg.mxu0
    %v595 = vsel %vm197, %v544, 0.0
    %596 = vadd.xlane.f32.xlu0 %v595
    %v597 = vpop.xlane.xlu0 %596
    %v598 = vsel %vm197, %v546, 0.0
    %599 = vadd.xlane.f32.xlu0 %v598
    %v600 = vpop.xlane.xlu0 %599
    %v601 = vrcp.pop %v597
    %v602 = vrcp.pop %v600
    %v603 = vmul.f32 %v589, %v601
    %v604 = vmul.f32 %v592, %v602
    %607 = vrot.lane.b32.xlu0 %v603, 16
    %v608 = vpop.permute.xlu0 %607
    %609 = vrot.lane.b32.xlu0 %v604, 16
    %v610 = vpop.permute.xlu0 %609
    %vm613 = vcmask 195712
    %614 = vst.msk [vmem:[#allocation2] sm:$0xff] %vm613, %v608
    %615 = vst.msk [vmem:[#allocation2 + $0x8] sm:$0xff] %vm613, %v610
    %616 = vrot.lane.b32.xlu0 %v101, 104
    %v617 = vpop.permute.xlu0 %616
    %618 = vrot.lane.b32.xlu0 %v104, 104
    %v619 = vpop.permute.xlu0 %618
    %620 = vrot.lane.b32.xlu0 %v101, 72
    %v621 = vpop.permute.xlu0 %620
    %622 = vrot.lane.b32.xlu0 %v104, 72
    %v623 = vpop.permute.xlu0 %622
    %v624 = vsel %vm113, %v617, 0
    %v626 = vsel %vm113, %v619, 0
    %v628 = vsel %vm113, %v621, 0
    %v630 = vsel %vm113, %v623, 0
    %632 = vmatprep.subr.mxu0 0.0
    %633 = vmatpush1.xpose.msra.mxu0 0.0
    %634 = vmatprep.subr.mxu0 0.0
    %635 = vmatpush1.xpose.msra.mxu0 0.0
    %636 = vmatprep.subr.mxu0 0.0
    %637 = vmatpush1.xpose.msra.mxu0 0.0
    %638 = vmatprep.subr.mxu0 0.0
    %639 = vmatpush1.xpose.msra.mxu0 0.0
    %640 = vmatprep.subr.mxu0 0.0
    %641 = vmatpush1.xpose.msra.mxu0 0.0
    %642 = vmatprep.subr.mxu0 0.0
    %643 = vmatpush1.xpose.msra.mxu0 0.0
    %644 = vmatprep.subr.mxu0 0.0
    %645 = vmatpush1.xpose.msra.mxu0 0.0
    %646 = vmatprep.subr.mxu0 0.0
    %647 = vmatpush1.xpose.msra.mxu0 0.0
    %648 = vmatprep.subr.mxu0 0.0
    %649 = vmatpush1.xpose.msra.mxu0 0.0
    %650 = vmatprep.subr.mxu0 0.0
    %651 = vmatpush1.xpose.msra.mxu0 0.0
    %652 = vmatprep.subr.mxu0 0.0
    %653 = vmatpush1.xpose.msra.mxu0 0.0
    %654 = vmatprep.subr.mxu0 0.0
    %655 = vmatpush1.xpose.msra.mxu0 0.0
    %656 = vmatprep.subr.mxu0 0.0
    %657 = vmatpush1.xpose.msra.mxu0 0.0
    %658 = vmatprep.subr.mxu0 0.0
    %659 = vmatpush1.xpose.msra.mxu0 0.0
    %660 = vmatprep.subr.mxu0 0.0
    %661 = vmatpush1.xpose.msra.mxu0 %v630
    %662 = vmatprep.subr.mxu0 0.0
    %663 = vmatpush1.xpose.msra.mxu0 %v628
    %664 = vmatprep.subr.mxu0 0.0
    %665 = vmatpush2.xpose.msra.mxu0 0.0
    %666 = vmatprep.subr.mxu0 0.0
    %667 = vmatpush2.xpose.msra.mxu0 0.0
    %668 = vmatprep.subr.mxu0 0.0
    %669 = vmatpush2.xpose.msra.mxu0 0.0
    %670 = vmatprep.subr.mxu0 0.0
    %671 = vmatpush2.xpose.msra.mxu0 0.0
    %672 = vmatprep.subr.mxu0 0.0
    %673 = vmatpush2.xpose.msra.mxu0 0.0
    %674 = vmatprep.subr.mxu0 0.0
    %675 = vmatpush2.xpose.msra.mxu0 0.0
    %676 = vmatprep.subr.mxu0 0.0
    %677 = vmatpush2.xpose.msra.mxu0 0.0
    %678 = vmatprep.subr.mxu0 0.0
    %679 = vmatpush2.xpose.msra.mxu0 0.0
    %680 = vmatprep.subr.mxu0 0.0
    %681 = vmatpush2.xpose.msra.mxu0 0.0
    %682 = vmatprep.subr.mxu0 0.0
    %683 = vmatpush2.xpose.msra.mxu0 0.0
    %684 = vmatprep.subr.mxu0 0.0
    %685 = vmatpush2.xpose.msra.mxu0 0.0
    %686 = vmatprep.subr.mxu0 0.0
    %687 = vmatpush2.xpose.msra.mxu0 0.0
    %688 = vmatprep.subr.mxu0 0.0
    %689 = vmatpush2.xpose.msra.mxu0 0.0
    %690 = vmatprep.subr.mxu0 0.0
    %691 = vmatpush2.xpose.msra.mxu0 0.0
    %692 = vmatprep.subr.mxu0 0.0
    %693 = vmatpush2.xpose.msra.mxu0 0.0
    %694 = vmatprep.subr.mxu0 0.0
    %695 = vmatpush2.xpose.msra.mxu0 0.0
    %696 = vmatprep.mubr.f32.mxu0 0.0
    %697 = vmatmul.mubr.f32.gmra.mxu0 %v624
    %v698 = vpop.f32.mrf.mxu0
    %v699 = vadd.f32 %v53, %v698
    %v700 = vpop.f32.mrf.mxu0
    %701 = vmatprep.mubr.f32.mxu0 0.0
    %702 = vmatmul.mubr.f32.gmra.mxu0 %v626
    %v703 = vpop.f32.mrf.mxu0
    %v704 = vadd.f32 %v54, %v703
    %v705 = vpop.f32.mrf.mxu0
    %706 = vdwg.mxu0
    %v707 = vsel %vm197, %v699, -inf
    %708 = vmax.xlane.f32.xlu0 %v707
    %v709 = vpop.xlane.xlu0 %708
    %v710 = vsel %vm197, %v704, -inf
    %711 = vmax.xlane.f32.xlu0 %v710
    %v712 = vpop.xlane.xlu0 %711
    %v713 = vsub.f32 %v699, %v709
    %v714 = vsub.f32 %v704, %v712
    %v715 = vmul.f32 %v713, 1.442695
    %v716 = vpow.pop %v715
    %v717 = vmul.f32 %v714, 1.442695
    %v718 = vpow.pop %v717
    %v719 = vpack.c.bf16 %v718, %v716
    %720 = vrot.lane.b32.xlu0 %v211, 40
    %v721 = vpop.permute.xlu0 %720
    %v724 = vsel %vm197, %v719, 0
    %726 = vmatprep.subr.bf16.mxu0 0
    %727 = vmatpush1.bf16.msra.mxu0 0
    %728 = vmatprep.subr.bf16.mxu0 0
    %729 = vmatpush1.bf16.msra.mxu0 0
    %730 = vmatprep.subr.bf16.mxu0 0
    %731 = vmatpush1.bf16.msra.mxu0 0
    %732 = vmatprep.subr.bf16.mxu0 0
    %733 = vmatpush1.bf16.msra.mxu0 0
    %734 = vmatprep.subr.bf16.mxu0 0
    %735 = vmatpush1.bf16.msra.mxu0 0
    %736 = vmatprep.subr.bf16.mxu0 0
    %737 = vmatpush1.bf16.msra.mxu0 0
    %738 = vmatprep.subr.bf16.mxu0 0
    %739 = vmatpush1.bf16.msra.mxu0 0
    %740 = vmatprep.subr.bf16.mxu0 0
    %741 = vmatpush1.bf16.msra.mxu0 %v721
    %742 = vmatprep.subr.bf16.mxu0 0
    %743 = vmatpush2.bf16.msra.mxu0 0
    %744 = vmatprep.subr.bf16.mxu0 0
    %745 = vmatpush2.bf16.msra.mxu0 0
    %746 = vmatprep.subr.bf16.mxu0 0
    %747 = vmatpush2.bf16.msra.mxu0 0
    %748 = vmatprep.subr.bf16.mxu0 0
    %749 = vmatpush2.bf16.msra.mxu0 0
    %750 = vmatprep.subr.bf16.mxu0 0
    %751 = vmatpush2.bf16.msra.mxu0 0
    %752 = vmatprep.subr.bf16.mxu0 0
    %753 = vmatpush2.bf16.msra.mxu0 0
    %754 = vmatprep.subr.bf16.mxu0 0
    %755 = vmatpush2.bf16.msra.mxu0 0
    %756 = vmatprep.subr.bf16.mxu0 0
    %757 = vmatpush2.bf16.msra.mxu0 0
    %758 = vmatprep.mubr.bf16.mxu0 0
    %759 = vmatmul.mubr.bf16.gmra.mxu0 %v724
    %v760 = vpop.f32.mrf.mxu0
    %v761 = vadd.f32 0.0, %v760
    %v762 = vpop.f32.mrf.mxu0
    %v763 = vpop.f32.mrf.mxu0
    %v764 = vadd.f32 0.0, %v763
    %v765 = vpop.f32.mrf.mxu0
    %766 = vdwg.mxu0
    %v767 = vsel %vm197, %v716, 0.0
    %768 = vadd.xlane.f32.xlu0 %v767
    %v769 = vpop.xlane.xlu0 %768
    %v770 = vsel %vm197, %v718, 0.0
    %771 = vadd.xlane.f32.xlu0 %v770
    %v772 = vpop.xlane.xlu0 %771
    %v773 = vrcp.pop %v769
    %v774 = vrcp.pop %v772
    %v775 = vmul.f32 %v761, %v773
    %v776 = vmul.f32 %v764, %v774
    %779 = vrot.lane.b32.xlu0 %v775, 24
    %v780 = vpop.permute.xlu0 %779
    %781 = vrot.lane.b32.xlu0 %v776, 24
    %v782 = vpop.permute.xlu0 %781
    %vm785 = vcmask 261312
    %786 = vst.msk [vmem:[#allocation2] sm:$0xff] %vm785, %v780
    %787 = vst.msk [vmem:[#allocation2 + $0x8] sm:$0xff] %vm785, %v782
    %v788 = vld [vmem:[#allocation2] sm:$0xff]
    %v789 = vld [vmem:[#allocation2 + $0x8] sm:$0xff]
    %v790 = vpack.c.bf16 %v789, %v788
    %v791 = vpack.c.bf16 %v48, %v47
    %v792 = vpack.c.bf16 %v50, %v49
    %v793 = vlaneseq
    %v794 = vshrl.u32 %v793, 7
    %v795 = vsub.s32 0, %v794
    %v796 = vrot.slane %v52, %v795
    %v798 = vsel %vm62, %v790, 0
    %800 = vmatprep.subr.bf16.mxu0 0
    %801 = vmatpush1.bf16.msra.mxu0 0
    %802 = vmatprep.subr.bf16.mxu0 0
    %803 = vmatpush1.bf16.msra.mxu0 0
    %804 = vmatprep.subr.bf16.mxu0 0
    %805 = vmatpush1.bf16.msra.mxu0 0
    %806 = vmatprep.subr.bf16.mxu0 0
    %807 = vmatpush1.bf16.msra.mxu0 0
    %808 = vmatprep.subr.bf16.mxu0 0
    %809 = vmatpush1.bf16.msra.mxu0 0
    %810 = vmatprep.subr.bf16.mxu0 0
    %811 = vmatpush1.bf16.msra.mxu0 0
    %812 = vmatprep.subr.bf16.mxu0 0
    %813 = vmatpush1.bf16.msra.mxu0 %v792
    %814 = vmatprep.subr.bf16.mxu0 0
    %815 = vmatpush1.bf16.msra.mxu0 %v791
    %816 = vmatprep.subr.bf16.mxu0 0
    %817 = vmatpush2.bf16.msra.mxu0 0
    %818 = vmatprep.subr.bf16.mxu0 0
    %819 = vmatpush2.bf16.msra.mxu0 0
    %820 = vmatprep.subr.bf16.mxu0 0
    %821 = vmatpush2.bf16.msra.mxu0 0
    %822 = vmatprep.subr.bf16.mxu0 0
    %823 = vmatpush2.bf16.msra.mxu0 0
    %824 = vmatprep.subr.bf16.mxu0 0
    %825 = vmatpush2.bf16.msra.mxu0 0
    %826 = vmatprep.subr.bf16.mxu0 0
    %827 = vmatpush2.bf16.msra.mxu0 0
    %828 = vmatprep.subr.bf16.mxu0 0
    %829 = vmatpush2.bf16.msra.mxu0 0
    %830 = vmatprep.subr.bf16.mxu0 0
    %831 = vmatpush2.bf16.msra.mxu0 0
    %832 = vmatprep.mubr.bf16.mxu0 0
    %833 = vmatmul.mubr.bf16.gmra.mxu0 %v798
    %v834 = vpop.f32.mrf.mxu0
    %v835 = vadd.f32 %v796, %v834
    %v836 = vpop.f32.mrf.mxu0
    %v837 = vpop.f32.mrf.mxu0
    %v838 = vadd.f32 %v796, %v837
    %v839 = vpop.f32.mrf.mxu0
    %840 = vdwg.mxu0
    %841 = vst.msk [vmem:[#allocation8] sm:$0xff] %vm62, %v835
    %842 = vst.msk [vmem:[#allocation8 + $0x8] sm:$0xff] %vm62, %v838
    // Predicated region
    $region18: #{tpu_custom_call.1} parent=1 // pred_check
      _
    $region19: #{tpu_custom_call.1} parent=1 // pred_check_branch
      %844 = sbr.rel (0) target = $region21
    $region20: #{tpu_custom_call.1} parent=1 // pred_region
      %s846 = ssub.s32 256, 256
      %847 = vsyncadd [#allocation5], %s846
      %s848 = sshll.u32 [#allocation8], 4
      %s849 = int_to_ptr.vmem [resolvable:$true] %s848
      %854 = dma.vmem_to_hbm [thread:$0]  %s849, 256, %s2, [#allocation5], 128, 128, 8
    $region21: #{tpu_custom_call.1} parent=1 // pred_fallthru
      _
    // Predicated region
    $region22: #{tpu_custom_call.1} parent=1 // pred_check
      _
    $region23: #{tpu_custom_call.1} parent=1 // pred_check_branch
      %856 = sbr.rel (0) target = $region25
    $region24: #{tpu_custom_call.1} parent=1 // pred_region
      %857 = dma.done [#allocation5], 256
    $region25: #{tpu_custom_call.1} parent=1 // pred_fallthru
      _
    %858 = vsyncpa [#allocation4], 1
    %859 = vsyncpa [#allocation7], 1
    %860 = vsyncpa [#allocation5], 1

</llo_original>
